<compile_context>
chip_gen: v7x
topology: tpu7x:2x2x1
jax: 0.10.0
libtpu: 0.0.40
codegen_flags: <defaults>
</compile_context>

<pallas_src>
import functools
import math

import jax
import jax.numpy as jnp
from jax import lax
from jax.experimental import pallas as pl
from jax.experimental.pallas import tpu as pltpu

VMEM_LIMIT = 32 * 1024 * 1024  # safe scoped budget on v5e / v6e / v7x


def _pick_tile(dim, candidates=(512, 256, 128)):
    """Largest MXU/lane-aligned tile that divides `dim`, else the full dim."""
    for c in candidates:
        if dim % c == 0:
            return c
    return dim


def _gelu_tanh(x):
    # TODO(synk): erf-based exact GELU not used; tanh approximation inside the kernel.
    c = math.sqrt(2.0 / math.pi)
    return 0.5 * x * (1.0 + jnp.tanh(c * (x + 0.044715 * x * x * x)))


# ----------------------------- tiled linear (+ fused bias / GELU) -----------

def _matmul_kernel(x_ref, w_ref, b_ref, o_ref, acc_ref, *, activation):
    @pl.when(pl.program_id(2) == 0)
    def _():
        acc_ref[...] = jnp.zeros_like(acc_ref)

    acc_ref[...] += jnp.dot(x_ref[...], w_ref[...],
                            preferred_element_type=jnp.float32)

    @pl.when(pl.program_id(2) == pl.num_programs(2) - 1)
    def _():
        out = acc_ref[...] + b_ref[...]
        if activation == "gelu":
            out = _gelu_tanh(out)
        o_ref[...] = out.astype(o_ref.dtype)


def linear(x2d, w, b, *, activation=None, out_dtype=jnp.float32):
    """y = act(x @ w + b). x: (M, K) any float dtype, w: (K, N) bf16, b: (N,) f32."""
    M, K = x2d.shape
    N = w.shape[1]
    tm = _pick_tile(M)
    tn = _pick_tile(N)
    tk = _pick_tile(K)
    grid = (M // tm, N // tn, K // tk)
    kern = functools.partial(_matmul_kernel, activation=activation)
    return pl.pallas_call(
        kern,
        grid=grid,
        in_specs=[
            pl.BlockSpec((tm, tk), lambda i, j, k: (i, k)),
            pl.BlockSpec((tk, tn), lambda i, j, k: (k, j)),
            pl.BlockSpec((1, tn), lambda i, j, k: (0, j)),
        ],
        out_specs=pl.BlockSpec((tm, tn), lambda i, j, k: (i, j)),
        out_shape=jax.ShapeDtypeStruct((M, N), out_dtype),
        scratch_shapes=[pltpu.VMEM((tm, tn), jnp.float32)],
        compiler_params=pltpu.CompilerParams(
            dimension_semantics=("parallel", "parallel", "arbitrary"),
            vmem_limit_bytes=VMEM_LIMIT,
        ),
    )(x2d.astype(jnp.bfloat16), w, b.reshape(1, N))


# ----------------------------- (residual +) LayerNorm ------------------------

def _ln_body(x, g, b, eps):
    mean = jnp.mean(x, axis=-1, keepdims=True)
    var = jnp.mean(jnp.square(x - mean), axis=-1, keepdims=True)
    inv = lax.rsqrt(var + eps)
    return (x - mean) * inv * g + b


def _layernorm_kernel(x_ref, g_ref, b_ref, o_ref, *, eps):
    x = x_ref[...].astype(jnp.float32)
    o_ref[...] = _ln_body(x, g_ref[...], b_ref[...], eps).astype(o_ref.dtype)


def _add_layernorm_kernel(x_ref, y_ref, g_ref, b_ref, o_ref, *, eps):
    x = x_ref[...].astype(jnp.float32) + y_ref[...].astype(jnp.float32)
    o_ref[...] = _ln_body(x, g_ref[...], b_ref[...], eps).astype(o_ref.dtype)


def _ln_call(kern, tensors, gamma, beta, M, H):
    tm = _pick_tile(M)
    row = pl.BlockSpec((tm, H), lambda i: (i, 0))
    vec = pl.BlockSpec((1, H), lambda i: (0, 0))
    return pl.pallas_call(
        kern,
        grid=(M // tm,),
        in_specs=[row] * len(tensors) + [vec, vec],
        out_specs=row,
        out_shape=jax.ShapeDtypeStruct((M, H), jnp.float32),
        compiler_params=pltpu.CompilerParams(
            dimension_semantics=("parallel",),
            vmem_limit_bytes=VMEM_LIMIT,
        ),
    )(*tensors, gamma.reshape(1, H), beta.reshape(1, H))


def layernorm(x2d, gamma, beta, eps=1e-12):
    M, H = x2d.shape
    return _ln_call(functools.partial(_layernorm_kernel, eps=eps),
                    (x2d,), gamma, beta, M, H)


def add_layernorm(x2d, y2d, gamma, beta, eps=1e-12):
    M, H = x2d.shape
    return _ln_call(functools.partial(_add_layernorm_kernel, eps=eps),
                    (x2d, y2d), gamma, beta, M, H)


# ----------------------------- attention (all heads per batch step) ---------

def _attn_kernel(qkv_ref, o_ref, *, num_heads, head_dim, scale):
    # qkv_ref block: (1, S, 3H) bf16, laid out [Q | K | V] along the lane axis.
    qkv = qkv_ref[0]                    # (S, 3H)
    H = num_heads * head_dim
    ctxs = []
    for h in range(num_heads):          # static unrolled loop over heads
        lo = h * head_dim
        q = qkv[:, lo:lo + head_dim]
        k = qkv[:, H + lo:H + lo + head_dim]
        v = qkv[:, 2 * H + lo:2 * H + lo + head_dim]
        # q @ k^T via dot_general contracting last axes (no explicit transpose)
        s = lax.dot_general(q, k, (((1,), (1,)), ((), ())),
                            preferred_element_type=jnp.float32) * scale
        m = jnp.max(s, axis=-1, keepdims=True)
        p = jnp.exp(s - m)
        denom = jnp.sum(p, axis=-1, keepdims=True)
        p = p * pl.reciprocal(denom, approx=True)
        ctx = jnp.dot(p.astype(jnp.bfloat16), v,
                      preferred_element_type=jnp.float32)
        ctxs.append(ctx)
    # single lane-dense (S, H) store
    o_ref[0] = jnp.concatenate(ctxs, axis=-1).astype(o_ref.dtype)


def attention(qkv, num_heads):
    # qkv: (B, S, 3H) bf16 -> context (B, S, H) bf16
    B, S, H3 = qkv.shape
    H = H3 // 3
    Dh = H // num_heads
    kern = functools.partial(_attn_kernel, num_heads=num_heads,
                             head_dim=Dh, scale=1.0 / math.sqrt(Dh))
    return pl.pallas_call(
        kern,
        grid=(B,),
        in_specs=[pl.BlockSpec((1, S, H3), lambda b: (b, 0, 0))],
        out_specs=pl.BlockSpec((1, S, H), lambda b: (b, 0, 0)),
        out_shape=jax.ShapeDtypeStruct((B, S, H), jnp.bfloat16),
        compiler_params=pltpu.CompilerParams(
            dimension_semantics=("parallel",),
            vmem_limit_bytes=VMEM_LIMIT,
        ),
    )(qkv)


# ----------------------------- Conv1d(padding='same') over sequence ---------

def _conv1d_kernel(x_ref, w_ref, b_ref, o_ref, *, K, S, left):
    # x: (1, S, Hin) bf16; w: (K, Hin, Hout) bf16; b: (1, Hout) f32
    x = x_ref[0]
    right = K - 1 - left
    parts = []
    if left:
        parts.append(jnp.zeros((left, x.shape[1]), x.dtype))
    parts.append(x)
    if right:
        parts.append(jnp.zeros((right, x.shape[1]), x.dtype))
    xp = jnp.concatenate(parts, axis=0) if len(parts) > 1 else x  # in-VMEM pad
    acc = jnp.dot(xp[0:S, :], w_ref[0], preferred_element_type=jnp.float32)
    for k in range(1, K):
        acc += jnp.dot(xp[k:k + S, :], w_ref[k],
                       preferred_element_type=jnp.float32)
    o_ref[0] = (acc + b_ref[...]).astype(o_ref.dtype)


def conv1d_same(x, wt, b):
    # x: (B, S, Hin); wt: (K, Hin, Hout) bf16 (== PyTorch (Hout,Hin,K) transposed); b: (Hout,)
    B, S, Hin = x.shape
    K, _, Hout = wt.shape
    left = (K - 1) // 2                  # PyTorch padding='same' convention
    kern = functools.partial(_conv1d_kernel, K=K, S=S, left=left)
    return pl.pallas_call(
        kern,
        grid=(B,),
        in_specs=[
            pl.BlockSpec((1, S, Hin), lambda i: (i, 0, 0)),
            pl.BlockSpec((K, Hin, Hout), lambda i: (0, 0, 0)),
            pl.BlockSpec((1, Hout), lambda i: (0, 0)),
        ],
        out_specs=pl.BlockSpec((1, S, Hout), lambda i: (i, 0, 0)),
        out_shape=jax.ShapeDtypeStruct((B, S, Hout), jnp.float32),
        compiler_params=pltpu.CompilerParams(
            dimension_semantics=("parallel",),
            vmem_limit_bytes=VMEM_LIMIT,
        ),
    )(x.astype(jnp.bfloat16), wt, b.reshape(1, Hout))


# ------------------------------ Model (glue) --------------------------------

def init_params(key, cfg):
    H = cfg['hidden_size']
    I = cfg['intermediate_size']
    K = cfg['kernel_size']
    std = 0.02

    def nrm(k, shape, dtype=jnp.bfloat16):
        return (jax.random.normal(k, shape, jnp.float32) * std).astype(dtype)

    keys = iter(jax.random.split(key, 16 + 8 * cfg['num_layers']))
    p = {
        'word_emb': nrm(next(keys), (cfg['vocab_size'], H), jnp.float32),
        'pos_emb': nrm(next(keys), (cfg['max_position'], H), jnp.float32),
        'type_emb': nrm(next(keys), (2, H), jnp.float32),
        'emb_ln_g': jnp.ones((H,), jnp.float32),
        'emb_ln_b': jnp.zeros((H,), jnp.float32),
        'layers': [],
    }
    for _ in range(cfg['num_layers']):
        lp = {
            # fused Q/K/V projection: (H, 3H) == concat(wq, wk, wv, axis=1)
            'w_qkv': nrm(next(keys), (H, 3 * H)),
            'b_qkv': jnp.zeros((3 * H,), jnp.float32),
            'wo': nrm(next(keys), (H, H)), 'bo': jnp.zeros((H,), jnp.float32),
            'ln1_g': jnp.ones((H,), jnp.float32), 'ln1_b': jnp.zeros((H,), jnp.float32),
            'w1': nrm(next(keys), (H, I)), 'b1': jnp.zeros((I,), jnp.float32),
            'w2': nrm(next(keys), (I, H)), 'b2': jnp.zeros((H,), jnp.float32),
            'ln2_g': jnp.ones((H,), jnp.float32), 'ln2_b': jnp.zeros((H,), jnp.float32),
        }
        p['layers'].append(lp)
    # Conv1d(H, H, K, padding='same'): PyTorch weight (out, in, K) stored as (K, in, out) bf16.
    w_cnn = nrm(next(keys), (H, H, K), jnp.float32)
    p['cnn_wt'] = jnp.transpose(w_cnn, (2, 1, 0)).astype(jnp.bfloat16)
    p['cnn_b'] = jnp.zeros((H,), jnp.float32)
    return p


def bert_layer(x2, lp, cfg, B, S):
    H = cfg['hidden_size']
    NH = cfg['num_heads']

    qkv = linear(x2, lp['w_qkv'], lp['b_qkv'], out_dtype=jnp.bfloat16)   # (B*S, 3H)
    ctx = attention(qkv.reshape(B, S, 3 * H), NH)                        # (B, S, H) bf16
    attn_out = linear(ctx.reshape(B * S, H), lp['wo'], lp['bo'])         # (B*S, H) f32
    x2 = add_layernorm(x2, attn_out, lp['ln1_g'], lp['ln1_b'])

    h = linear(x2, lp['w1'], lp['b1'], activation="gelu",
               out_dtype=jnp.bfloat16)                                   # (B*S, I)
    h = linear(h, lp['w2'], lp['b2'])                                    # (B*S, H) f32
    x2 = add_layernorm(x2, h, lp['ln2_g'], lp['ln2_b'])
    return x2


def bert_cnn_forward(params, token_ids, cfg):
    B, S = token_ids.shape
    H = cfg['hidden_size']

    # embeddings (gather + broadcast adds are glue)
    word = jnp.take(params['word_emb'], token_ids, axis=0)          # (B, S, H)
    pos = params['pos_emb'][:S][None, :, :]
    typ = params['type_emb'][0][None, None, :]
    emb = (word + pos + typ).reshape(B * S, H)
    x2 = layernorm(emb, params['emb_ln_g'], params['emb_ln_b'])

    for lp in params['layers']:
        x2 = bert_layer(x2, lp, cfg, B, S)

    # x2 == bert(x)[0] flattened. CNN head: Conv1d over sequence, 'same' padding,
    # computed directly in (B, S, H) layout (matches PyTorch transpose/transpose).
    y = conv1d_same(x2.reshape(B, S, H), params['cnn_wt'], params['cnn_b'])
    return y


if __name__ == "__main__":
    cfg = dict(
        hidden_size=32,
        num_layers=2,
        num_heads=4,
        intermediate_size=64,
        vocab_size=30,
        max_position=16,
        kernel_size=3,
    )
    B, S = 2, 8

    key = jax.random.PRNGKey(0)
    pkey, xkey = jax.random.split(key)
    params = init_params(pkey, cfg)
    token_ids = jax.random.randint(xkey, (B, S), 0, cfg['vocab_size'], dtype=jnp.int32)

    out = bert_cnn_forward(params, token_ids, cfg)
    out = jax.block_until_ready(out)
    assert out.shape == (B, S, cfg['hidden_size']), out.shape
    assert bool(jnp.all(jnp.isfinite(out)))
    print("KERNEL_OK")
</pallas_src>

<mosaic_0001>
module attributes {stable_mosaic.version = 11 : i64} {
  func.func @_layernorm_kernel(%arg0: i32, %arg1: memref<16x32xf32, #tpu.memory_space<vmem>>, %arg2: memref<1x32xf32, #tpu.memory_space<vmem>>, %arg3: memref<1x32xf32, #tpu.memory_space<vmem>>, %arg4: memref<16x32xf32, #tpu.memory_space<vmem>>) attributes {dimension_semantics = [#tpu.dimension_semantics<parallel>], iteration_bounds = array<i64: 1>, scalar_prefetch = 0 : i64, scratch_operands = 0 : i64, tpu.core_type = #tpu.core_type<tc>, window_params = [{transform_indices = @transform_0, window_bounds = array<i64: 16, 32>}, {pipeline_mode = #tpu.pipeline_mode<synchronous>, transform_indices = @transform_1, window_bounds = array<i64: 1, 32>}, {pipeline_mode = #tpu.pipeline_mode<synchronous>, transform_indices = @transform_2, window_bounds = array<i64: 1, 32>}, {transform_indices = @transform_3, window_bounds = array<i64: 16, 32>}]} {
    %c0 = arith.constant 0 : index
    %c0_0 = arith.constant 0 : index
    %0 = vector.load %arg1[%c0, %c0_0] : memref<16x32xf32, #tpu.memory_space<vmem>>, vector<16x32xf32>
    %c0_1 = arith.constant 0 : index
    %c0_2 = arith.constant 0 : index
    %1 = vector.load %arg2[%c0_1, %c0_2] : memref<1x32xf32, #tpu.memory_space<vmem>>, vector<1x32xf32>
    %c0_3 = arith.constant 0 : index
    %c0_4 = arith.constant 0 : index
    %2 = vector.load %arg3[%c0_3, %c0_4] : memref<1x32xf32, #tpu.memory_space<vmem>>, vector<1x32xf32>
    %cst = arith.constant dense<0.000000e+00> : vector<16xf32>
    %3 = vector.multi_reduction <add>, %0, %cst [1] : vector<16x32xf32> to vector<16xf32>
    %4 = vector.shape_cast %3 : vector<16xf32> to vector<16x1xf32>
    %cst_5 = arith.constant 3.200000e+01 : f32
    %5 = vector.broadcast %cst_5 : f32 to vector<16x1xf32>
    %6 = arith.divf %4, %5 : vector<16x1xf32>
    %7 = vector.broadcast %6 : vector<16x1xf32> to vector<16x32xf32>
    %8 = arith.subf %0, %7 : vector<16x32xf32>
    %9 = arith.mulf %8, %8 : vector<16x32xf32>
    %cst_6 = arith.constant dense<0.000000e+00> : vector<16xf32>
    %10 = vector.multi_reduction <add>, %9, %cst_6 [1] : vector<16x32xf32> to vector<16xf32>
    %11 = vector.shape_cast %10 : vector<16xf32> to vector<16x1xf32>
    %cst_7 = arith.constant 3.200000e+01 : f32
    %12 = vector.broadcast %cst_7 : f32 to vector<16x1xf32>
    %13 = arith.divf %11, %12 : vector<16x1xf32>
    %cst_8 = arith.constant 9.99999996E-13 : f32
    %14 = vector.broadcast %cst_8 : f32 to vector<16x1xf32>
    %15 = arith.addf %13, %14 : vector<16x1xf32>
    %16 = math.rsqrt %15 : vector<16x1xf32>
    %17 = vector.broadcast %6 : vector<16x1xf32> to vector<16x32xf32>
    %18 = arith.subf %0, %17 : vector<16x32xf32>
    %19 = vector.broadcast %16 : vector<16x1xf32> to vector<16x32xf32>
    %20 = arith.mulf %18, %19 : vector<16x32xf32>
    %21 = vector.broadcast %1 : vector<1x32xf32> to vector<16x32xf32>
    %22 = arith.mulf %20, %21 : vector<16x32xf32>
    %23 = vector.broadcast %2 : vector<1x32xf32> to vector<16x32xf32>
    %24 = arith.addf %22, %23 : vector<16x32xf32>
    %c0_9 = arith.constant 0 : index
    %c0_10 = arith.constant 0 : index
    %25 = vector.load %arg4[%c0_9, %c0_10] : memref<16x32xf32, #tpu.memory_space<vmem>>, vector<16x32xf32>
    tpu.vector_store %arg4[%c0_9, %c0_10], %24 {strides = array<i32>} : memref<16x32xf32, #tpu.memory_space<vmem>>, vector<16x32xf32>,
    return
  }
  func.func @transform_0(%arg0: i32) -> (i32, i32) {
    %c0_i32 = arith.constant 0 : i32
    %c0_i32_0 = arith.constant 0 : i32
    return %arg0, %c0_i32 : i32, i32
  }
  func.func @transform_1(%arg0: i32) -> (i32, i32) {
    %c0_i32 = arith.constant 0 : i32
    %c0_i32_0 = arith.constant 0 : i32
    %c0_i32_1 = arith.constant 0 : i32
    return %c0_i32, %c0_i32_0 : i32, i32
  }
  func.func @transform_2(%arg0: i32) -> (i32, i32) {
    %c0_i32 = arith.constant 0 : i32
    %c0_i32_0 = arith.constant 0 : i32
    %c0_i32_1 = arith.constant 0 : i32
    return %c0_i32, %c0_i32_0 : i32, i32
  }
  func.func @transform_3(%arg0: i32) -> (i32, i32) {
    %c0_i32 = arith.constant 0 : i32
    %c0_i32_0 = arith.constant 0 : i32
    return %arg0, %c0_i32 : i32, i32
  }
}

</mosaic_0001>

<llo_original>
// kernel: tpu_custom_call.1
$region0: #{tpu_custom_call.1}
  #allocation0 [shape = 'u32[]', space=smem, size = 0x4, offset = 0x4, fixed_abs, tag = 'smem constant byte address 0x4 - core index']
  #allocation1 [shape = 'u32[144,128]{1,0:T(1,128)}', space=vmem, size = 0x12000, scoped, tag = 'internal scratch']
  %s0 = inlined_call_operand.hbm [shape: f32[16,32], index: 0, kind: input, shape index: {}]
  %s1 = inlined_call_operand.vmem [shape: f32[1,32], index: 1, kind: input, shape index: {}]
  %s2 = inlined_call_operand.vmem [shape: f32[1,32], index: 2, kind: input, shape index: {}]
  %s3 = inlined_call_operand.hbm [shape: f32[16,32], index: 3, kind: output, shape index: {}]
  %s4 = sld [smem:[#allocation0]]
  $region26: #{tpu_custom_call.1} parent=0
    _
  %s6 = ssub.s32 1, %s4
  %s7 = scalar_select 0, %s6, %s4
  $region1: #{tpu_custom_call.1} parent=0
    #allocation2 [shape = 'u8[8192]{0}', space=vmem, size = 0x2000, scoped, tag = 'input window, operand 0, single buffered']
    #allocation3 [shape = 's32[1]{0}', space=sflag, size = 0x4, scoped, tag = 'scoped memory for tpu_custom_call.1']
    #allocation4 [shape = 's32[1]{0}', space=sflag, size = 0x4, scoped, tag = 'scoped memory for tpu_custom_call.1']
    #allocation5 [shape = 'u8[8192]{0}', space=vmem, size = 0x2000, scoped, tag = 'output window, operand 0, single buffered']
    %8 = vsyncpa [#allocation3], 0
    %9 = vsyncpa [#allocation4], 0
    // Predicated region
    $region2: #{tpu_custom_call.1} parent=1 // pred_check
      _
    $region3: #{tpu_custom_call.1} parent=1 // pred_check_branch
      %11 = sbr.rel (0) target = $region5
    $region4: #{tpu_custom_call.1} parent=1 // pred_region
      %s13 = ssub.s32 256, 256
      %14 = vsyncadd [#allocation3], %s13
      %s15 = sshll.u32 [#allocation2], 4
      %s16 = int_to_ptr.vmem [resolvable:$true] %s15
      %21 = dma.hbm_to_vmem [thread:$0]  %s0, 256, %s16, [#allocation3], 128, 128, 8
    $region5: #{tpu_custom_call.1} parent=1 // pred_fallthru
      _
    // Predicated region
    $region6: #{tpu_custom_call.1} parent=1 // pred_check
      _
    $region7: #{tpu_custom_call.1} parent=1 // pred_check_branch
      %23 = sbr.rel (0) target = $region9
    $region8: #{tpu_custom_call.1} parent=1 // pred_region
      _
    $region9: #{tpu_custom_call.1} parent=1 // pred_fallthru
      _
    // Predicated region
    $region10: #{tpu_custom_call.1} parent=1 // pred_check
      _
    $region11: #{tpu_custom_call.1} parent=1 // pred_check_branch
      %25 = sbr.rel (0) target = $region13
    $region12: #{tpu_custom_call.1} parent=1 // pred_region
      _
    $region13: #{tpu_custom_call.1} parent=1 // pred_fallthru
      _
    // Predicated region
    $region14: #{tpu_custom_call.1} parent=1 // pred_check
      _
    $region15: #{tpu_custom_call.1} parent=1 // pred_check_branch
      %27 = sbr.rel (0) target = $region17
    $region16: #{tpu_custom_call.1} parent=1 // pred_region
      %28 = dma.done [#allocation3], 256
    $region17: #{tpu_custom_call.1} parent=1 // pred_fallthru
      _
    %v29 = vld [vmem:[#allocation2] sm:$0xff]
    %v30 = vld [vmem:[#allocation2 + $0x8] sm:$0xff]
    %v31 = vld [vmem:[%s1] sm:$0x1]
    %v32 = vld [vmem:[%s2] sm:$0x1]
    %vm33 = vcmask 261120
    %v34 = vsel %vm33, %v29, 0.0
    %35 = vadd.xlane.f32.xlu0 %v34
    %v36 = vpop.xlane.xlu0 %35
    %v37 = vsel %vm33, %v30, 0.0
    %38 = vadd.xlane.f32.xlu0 %v37
    %v39 = vpop.xlane.xlu0 %38
    %v40 = vrcp.pop 32.0
    %v41 = vmul.f32 %v36, %v40
    %v42 = vmul.f32 %v39, %v40
    %v43 = vsub.f32 %v29, %v41
    %v44 = vsub.f32 %v30, %v42
    %v45 = vmul.f32 %v43, %v43
    %v46 = vmul.f32 %v44, %v44
    %v47 = vsel %vm33, %v45, 0.0
    %48 = vadd.xlane.f32.xlu0 %v47
    %v49 = vpop.xlane.xlu0 %48
    %v50 = vsel %vm33, %v46, 0.0
    %51 = vadd.xlane.f32.xlu0 %v50
    %v52 = vpop.xlane.xlu0 %51
    %v53 = vmul.f32 %v49, %v40
    %v54 = vmul.f32 %v52, %v40
    %v55 = vadd.f32 %v53, 1e-12
    %v56 = vadd.f32 %v54, 1e-12
    %v57 = vrsqrt.pop %v55
    %v58 = vrsqrt.pop %v56
    %v59 = vmul.f32 %v43, %v57
    %v60 = vmul.f32 %v44, %v58
    %v62 = vlaneseq
    %v63 = vshrl.u32 %v62, 7
    %v64 = vsub.s32 0, %v63
    %v65 = vrot.slane %v31, %v64
    %v67 = vmul.f32 %v59, %v65
    %v68 = vmul.f32 %v60, %v65
    %v70 = vlaneseq
    %v71 = vshrl.u32 %v70, 7
    %v72 = vsub.s32 0, %v71
    %v73 = vrot.slane %v32, %v72
    %v75 = vadd.f32 %v67, %v73
    %v76 = vadd.f32 %v68, %v73
    %77 = vst.msk [vmem:[#allocation5] sm:$0xff] %vm33, %v75
    %78 = vst.msk [vmem:[#allocation5 + $0x8] sm:$0xff] %vm33, %v76
    // Predicated region
    $region18: #{tpu_custom_call.1} parent=1 // pred_check
      _
    $region19: #{tpu_custom_call.1} parent=1 // pred_check_branch
      %80 = sbr.rel (0) target = $region21
    $region20: #{tpu_custom_call.1} parent=1 // pred_region
      %s82 = ssub.s32 256, 256
      %83 = vsyncadd [#allocation4], %s82
      %s84 = sshll.u32 [#allocation5], 4
      %s85 = int_to_ptr.vmem [resolvable:$true] %s84
      %90 = dma.vmem_to_hbm [thread:$0]  %s85, 256, %s3, [#allocation4], 128, 128, 8
    $region21: #{tpu_custom_call.1} parent=1 // pred_fallthru
      _
    // Predicated region
    $region22: #{tpu_custom_call.1} parent=1 // pred_check
      _
    $region23: #{tpu_custom_call.1} parent=1 // pred_check_branch
      %92 = sbr.rel (0) target = $region25
    $region24: #{tpu_custom_call.1} parent=1 // pred_region
      %93 = dma.done [#allocation4], 256
    $region25: #{tpu_custom_call.1} parent=1 // pred_fallthru
      _
    %94 = vsyncpa [#allocation3], 1
    %95 = vsyncpa [#allocation4], 1

</llo_original>
